<compile_context>
chip_gen: v6e
topology: v6e:2x2x1
jax: 0.10.0
libtpu: 0.0.40
codegen_flags: <defaults>
</compile_context>

<pallas_src>
import functools

import jax
import jax.numpy as jnp
from jax import lax
from jax.experimental import pallas as pl
from jax.experimental.pallas import tpu as pltpu


def _conv3x3_softplus_kernel(w_ref, b_ref, p_ref, o_ref):
    # w_ref: (F_pad, K_pad)  bf16   reshaped conv weights
    # b_ref: (F_pad, 1)      f32    bias
    # p_ref: (1, K_pad, TN)  bf16   im2col patches for this (batch, lane-tile)
    # o_ref: (1, F_pad, TN)  f32    output tile (channels on sublanes, pixels on lanes)
    acc = jnp.dot(w_ref[...], p_ref[0], preferred_element_type=jnp.float32)
    acc = acc + b_ref[...]  # (F_pad, 1) broadcast over lanes, f32

    # PyTorch Softplus (beta=1, threshold=20): x > 20 -> x, else log1p(exp(x))
    safe = jnp.minimum(acc, 20.0)
    o_ref[0] = jnp.where(acc > 20.0, acc, jnp.log1p(jnp.exp(safe)))


def _pick_lane_tile(hw):
    # Largest lane tile (multiple of 128, <= 2048) dividing H*W; else full extent.
    for tn in (2048, 1024, 512, 256, 128):
        if hw % tn == 0:
            return tn
    return hw


@functools.partial(jax.jit, static_argnums=(3,))
def cnn_block_forward(x_nchw, w_hwio, bias, filters):
    """x_nchw: [B, 3, H, W] f32; w_hwio: [3, 3, 3, filters]; bias: [filters]."""
    B, Cin, H, W = x_nchw.shape
    HW = H * W
    K = 9 * Cin                                   # 27
    K_pad = max(8, ((K + 7) // 8) * 8)            # 32 (cheap contraction pad)
    F_pad = max(8, ((filters + 7) // 8) * 8)      # sublane multiple

    # --- im2col in the wrapper (lane axis = H*W, lane-dense) ------------------
    x_pad = jnp.pad(x_nchw, ((0, 0), (0, 0), (1, 1), (1, 1)))   # spatial pad=1
    cols = []
    for dy in range(3):
        for dx in range(3):
            cols.append(x_pad[:, :, dy:dy + H, dx:dx + W].reshape(B, Cin, HW))
    patches = jnp.concatenate(cols, axis=1)                      # (B, 9*Cin, HW)
    patches = jnp.pad(patches, ((0, 0), (0, K_pad - K), (0, 0)))
    patches = patches.astype(jnp.bfloat16)

    # weights (3,3,Cin,filters) -> (filters, 9*Cin), K ordered (dy, dx, c)
    w_r = jnp.transpose(w_hwio, (3, 0, 1, 2)).reshape(filters, K)
    w_r = jnp.pad(w_r, ((0, F_pad - filters), (0, K_pad - K))).astype(jnp.bfloat16)
    b_p = jnp.pad(bias, (0, F_pad - filters)).astype(jnp.float32).reshape(F_pad, 1)

    TN = _pick_lane_tile(HW)
    grid = (B, HW // TN)

    out = pl.pallas_call(
        _conv3x3_softplus_kernel,
        out_shape=jax.ShapeDtypeStruct((B, F_pad, HW), jnp.float32),
        grid_spec=pltpu.PrefetchScalarGridSpec(
            num_scalar_prefetch=0,
            grid=grid,
            in_specs=[
                pl.BlockSpec((F_pad, K_pad), lambda b, t: (0, 0)),
                pl.BlockSpec((F_pad, 1), lambda b, t: (0, 0)),
                pl.BlockSpec((1, K_pad, TN), lambda b, t: (b, 0, t)),
            ],
            out_specs=pl.BlockSpec((1, F_pad, TN), lambda b, t: (b, 0, t)),
        ),
        compiler_params=pltpu.CompilerParams(
            dimension_semantics=("parallel", "parallel")),
    )(w_r, b_p, patches)

    out = out[:, :filters, :]                 # no-op when filters % 8 == 0
    return out.reshape(B, filters, H, W)      # free reshape, already NCHW order


def _conv_softplus_ref(x_nchw, w_hwio, bias):
    """Reference: f32 conv (HIGHEST precision) + PyTorch-style softplus."""
    w_oihw = jnp.transpose(w_hwio, (3, 2, 0, 1))
    y = lax.conv_general_dilated(
        x_nchw, w_oihw, window_strides=(1, 1), padding=((1, 1), (1, 1)),
        dimension_numbers=("NCHW", "OIHW", "NCHW"),
        precision=lax.Precision.HIGHEST)
    y = y + bias[None, :, None, None]
    return jnp.where(y > 20.0, y, jnp.log1p(jnp.exp(jnp.minimum(y, 20.0))))


if __name__ == "__main__":
    key = jax.random.PRNGKey(0)
    kx, kw, kb = jax.random.split(key, 3)

    B, Cin, H, W = 2, 3, 16, 16
    filters = 8

    x = jax.random.normal(kx, (B, Cin, H, W), dtype=jnp.float32)
    # Deterministic parameter init (shapes match nn.Conv2d(3, filters, 3, padding=1)).
    fan_in = Cin * 3 * 3
    bound = 1.0 / (fan_in ** 0.5)
    w_hwio = jax.random.uniform(kw, (3, 3, Cin, filters),
                                minval=-bound, maxval=bound, dtype=jnp.float32)
    bias = jax.random.uniform(kb, (filters,),
                              minval=-bound, maxval=bound, dtype=jnp.float32)

    out = jax.block_until_ready(cnn_block_forward(x, w_hwio, bias, filters))
    assert out.shape == (B, filters, H, W)

    # Tight check: reference computed with the same bf16-quantized operands
    # (isolates accumulation-order differences only).
    xq = x.astype(jnp.bfloat16).astype(jnp.float32)
    wq = w_hwio.astype(jnp.bfloat16).astype(jnp.float32)
    ref_q = _conv_softplus_ref(xq, wq, bias)
    assert jnp.allclose(out, ref_q, atol=1e-4, rtol=1e-4)

    # Loose check against the full-f32 module semantics (bf16 operand quantization).
    ref_f32 = _conv_softplus_ref(x, w_hwio, bias)
    assert jnp.allclose(out, ref_f32, atol=2e-2, rtol=2e-2)

    print("KERNEL_OK")
</pallas_src>

<mosaic_0001>
module attributes {stable_mosaic.version = 11 : i64} {
  func.func @_conv3x3_softplus_kernel(%arg0: i32, %arg1: i32, %arg2: memref<8x32xbf16, #tpu.memory_space<vmem>>, %arg3: memref<8x1xf32, #tpu.memory_space<vmem>>, %arg4: memref<1x32x256xbf16, #tpu.memory_space<vmem>>, %arg5: memref<1x8x256xf32, #tpu.memory_space<vmem>>) attributes {dimension_semantics = [#tpu.dimension_semantics<parallel>, #tpu.dimension_semantics<parallel>], iteration_bounds = array<i64: 2, 1>, scalar_prefetch = 0 : i64, scratch_operands = 0 : i64, tpu.core_type = #tpu.core_type<tc>, window_params = [{pipeline_mode = #tpu.pipeline_mode<synchronous>, transform_indices = @transform_0, window_bounds = array<i64: 8, 32>}, {pipeline_mode = #tpu.pipeline_mode<synchronous>, transform_indices = @transform_1, window_bounds = array<i64: 8, 1>}, {transform_indices = @transform_2, window_bounds = array<i64: 1, 32, 256>}, {transform_indices = @transform_3, window_bounds = array<i64: 1, 8, 256>}]} {
    %c0 = arith.constant 0 : index
    %c0_0 = arith.constant 0 : index
    %0 = vector.load %arg2[%c0, %c0_0] : memref<8x32xbf16, #tpu.memory_space<vmem>>, vector<8x32xbf16>
    %c0_1 = arith.constant 0 : index
    %c0_2 = arith.constant 0 : index
    %c0_3 = arith.constant 0 : index
    %1 = vector.load %arg4[%c0_1, %c0_2, %c0_3] : memref<1x32x256xbf16, #tpu.memory_space<vmem>>, vector<1x32x256xbf16>
    %2 = vector.shape_cast %1 : vector<1x32x256xbf16> to vector<32x256xbf16>
    %cst = arith.constant dense<0.000000e+00> : vector<8x256xf32>
    %3 = tpu.matmul %0, %2, %cst {dimension_numbers = #tpu.dot_dimension_numbers<[1], [0], [0], [1], [0, 0, 1, 1], [], []>} : vector<8x32xbf16>, vector<32x256xbf16>, vector<8x256xf32> -> vector<8x256xf32>
    %c0_4 = arith.constant 0 : index
    %c0_5 = arith.constant 0 : index
    %4 = vector.load %arg3[%c0_4, %c0_5] : memref<8x1xf32, #tpu.memory_space<vmem>>, vector<8x1xf32>
    %5 = vector.broadcast %4 : vector<8x1xf32> to vector<8x256xf32>
    %6 = arith.addf %3, %5 : vector<8x256xf32>
    %cst_6 = arith.constant 2.000000e+01 : f32
    %7 = vector.broadcast %cst_6 : f32 to vector<8x256xf32>
    %8 = arith.minimumf %6, %7 : vector<8x256xf32>
    %cst_7 = arith.constant 2.000000e+01 : f32
    %9 = vector.broadcast %cst_7 : f32 to vector<8x256xf32>
    %10 = arith.cmpf ogt, %6, %9 : vector<8x256xf32>
    %11 = math.exp %8 : vector<8x256xf32>
    %12 = math.log1p %11 : vector<8x256xf32>
    %13 = arith.select %10, %6, %12 : vector<8x256xi1>, vector<8x256xf32>
    %c0_8 = arith.constant 0 : index
    %c0_9 = arith.constant 0 : index
    %c0_10 = arith.constant 0 : index
    %14 = vector.load %arg5[%c0_8, %c0_9, %c0_10] : memref<1x8x256xf32, #tpu.memory_space<vmem>>, vector<1x8x256xf32>
    %15 = vector.shape_cast %14 : vector<1x8x256xf32> to vector<8x256xf32>
    %16 = vector.shape_cast %13 : vector<8x256xf32> to vector<1x8x256xf32>
    tpu.vector_store %arg5[%c0_8, %c0_9, %c0_10], %16 {strides = array<i32>} : memref<1x8x256xf32, #tpu.memory_space<vmem>>, vector<1x8x256xf32>,
    return
  }
  func.func @transform_0(%arg0: i32, %arg1: i32) -> (i32, i32) {
    %c0_i32 = arith.constant 0 : i32
    %c0_i32_0 = arith.constant 0 : i32
    %c0_i32_1 = arith.constant 0 : i32
    return %c0_i32, %c0_i32_0 : i32, i32
  }
  func.func @transform_1(%arg0: i32, %arg1: i32) -> (i32, i32) {
    %c0_i32 = arith.constant 0 : i32
    %c0_i32_0 = arith.constant 0 : i32
    %c0_i32_1 = arith.constant 0 : i32
    return %c0_i32, %c0_i32_0 : i32, i32
  }
  func.func @transform_2(%arg0: i32, %arg1: i32) -> (i32, i32, i32) {
    %c0_i32 = arith.constant 0 : i32
    %c0_i32_0 = arith.constant 0 : i32
    return %arg0, %c0_i32, %arg1 : i32, i32, i32
  }
  func.func @transform_3(%arg0: i32, %arg1: i32) -> (i32, i32, i32) {
    %c0_i32 = arith.constant 0 : i32
    %c0_i32_0 = arith.constant 0 : i32
    return %arg0, %c0_i32, %arg1 : i32, i32, i32
  }
}

</mosaic_0001>

<llo_original>
// kernel: cnn_block_forward.1
$region0: #{cnn_block_forward.1}
  #allocation0 [shape = 'u32[]', space=smem, size = 0x4, offset = 0x4, fixed_abs, tag = 'smem constant byte address 0x4 - core index']
  #allocation1 [shape = 'u32[144,128]{1,0:T(1,128)}', space=vmem, size = 0x12000, scoped, tag = 'internal scratch']
  %s0 = inlined_call_operand.vmem [shape: bf16[8,32], index: 0, kind: input, shape index: {}]
  %s1 = inlined_call_operand.vmem [shape: f32[8,1], index: 1, kind: input, shape index: {}]
  %s2 = inlined_call_operand.vmem [shape: bf16[2,32,256], index: 2, kind: input, shape index: {}]
  %s3 = inlined_call_operand.vmem [shape: f32[2,8,256], index: 3, kind: output, shape index: {}]
  %s4 = sld [smem:[#allocation0]]
  $region45: #{cnn_block_forward.1} parent=0
    _
  %s6 = ssub.s32 1, %s4
  %s7 = scalar_select 0, %s6, %s4
  loop: start=0, step=1, limit=4
  $region2: #{cnn_block_forward.1} parent=0 // loop_pre_header
    _
  $region3: #{cnn_block_forward.1} parent=0 // loop_header
    %s9 = sphi 0, %s13
    %p10 = scmp.ge.s32.totalorder %s9, 4
    %s16 = sphi 0, %s28
    %s17 = sphi 0, %s24
    %s18 = sphi 0, %s16
    %s19 = sphi 0, %s17
    %s20 = sphi 0, %s18
    %s21 = sphi 0, %s19
    %s29 = sphi 0, %s29
    %s31 = sphi 0, %s29
    %s32 = sphi 0, %s31
    %s46 = sphi 0, %s32
    %s50 = sphi 0, %s50
    %s52 = sphi 0, %s50
    %s53 = sphi 0, %s52
    %s67 = sphi 0, %s53
    %s75 = sphi 0, %s77
    %s78 = sphi 0, %s75
    %s79 = sphi 0, %s78
    %s95 = sphi 0, %s79
    %s103 = sphi 0, %s105
    %s106 = sphi 0, %s103
    %s107 = sphi 0, %s106
    %s123 = sphi 0, %s107
  $region4: #{cnn_block_forward.1} parent=0 // loop_header_branch
    %12 = sbr.rel (%p10) target = $region8
  $region5: #{cnn_block_forward.1} parent=0 // loop_body
    %s14 = ssub.s32 %s9, 1
    %s15 = ssub.s32 %s9, 2
    %s22 = sadd.s32 1, %s17
    %p23 = scmp.ge.s32.totalorder %s22, 1
    %s24 = scalar_select %p23, 0, %s22
    %s25 = sadd.s32 1, %s16
    %s26 = scalar_select %p23, %s25, %s16
    %p27 = scmp.ge.s32.totalorder %s26, 2
    %s28 = scalar_select %p27, 0, %s26
    %s30 = sadd.s32 %s29, 1
    %p33 = scmp.eq.s32.totalorder %s9, 1
    %p34 = scmp.ne.s32.totalorder %s29, %s31
    %p35 = scmp.eq.s32.totalorder %s9, 0
    %p36 = por %p34, %p35
    %p37 = scmp.ne.s32.totalorder %s29, %s31
    %p38 = scmp.eq.s32.totalorder %s14, 1
    %p39 = por %p37, %p38
    %p40 = scmp.ne.s32.totalorder %s31, %s32
    %p41 = scmp.eq.s32.totalorder %s14, 0
    %p42 = por %p40, %p41
    %p43 = scmp.ne.s32.totalorder %s31, %s32
    %p44 = scmp.eq.s32.totalorder %s15, 1
    %p45 = por %p43, %p44
    %p47 = scmp.ne.s32.totalorder %s32, %s46
    %p48 = scmp.eq.s32.totalorder %s15, 0
    %p49 = por %p47, %p48
    %s51 = sadd.s32 %s50, 1
    %p54 = scmp.eq.s32.totalorder %s9, 1
    %p55 = scmp.ne.s32.totalorder %s50, %s52
    %p56 = scmp.eq.s32.totalorder %s9, 0
    %p57 = por %p55, %p56
    %p58 = scmp.ne.s32.totalorder %s50, %s52
    %p59 = scmp.eq.s32.totalorder %s14, 1
    %p60 = por %p58, %p59
    %p61 = scmp.ne.s32.totalorder %s52, %s53
    %p62 = scmp.eq.s32.totalorder %s14, 0
    %p63 = por %p61, %p62
    %p64 = scmp.ne.s32.totalorder %s52, %s53
    %p65 = scmp.eq.s32.totalorder %s15, 1
    %p66 = por %p64, %p65
    %p68 = scmp.ne.s32.totalorder %s53, %s67
    %p69 = scmp.eq.s32.totalorder %s15, 0
    %p70 = por %p68, %p69
    %s71 = ssub.s32 %s16, %s28
    %s72 = ssub.s32 %s17, %s24
    %s73 = sor.u32 %s71, %s72
    %p74 = scmp.eq.s32.totalorder %s73, 0
    %s76 = sadd.s32 %s75, 1
    %s77 = scalar_select %p74, %s75, %s76
    %p80 = pneg %p74
    %p81 = scmp.eq.s32.totalorder %s9, 1
    %p82 = por %p80, %p81
    %p83 = scmp.ne.s32.totalorder %s75, %s78
    %p84 = scmp.eq.s32.totalorder %s9, 0
    %p85 = por %p83, %p84
    %p86 = scmp.ne.s32.totalorder %s75, %s78
    %p87 = scmp.eq.s32.totalorder %s14, 1
    %p88 = por %p86, %p87
    %p89 = scmp.ne.s32.totalorder %s78, %s79
    %p90 = scmp.eq.s32.totalorder %s14, 0
    %p91 = por %p89, %p90
    %p92 = scmp.ne.s32.totalorder %s78, %s79
    %p93 = scmp.eq.s32.totalorder %s15, 1
    %p94 = por %p92, %p93
    %p96 = scmp.ne.s32.totalorder %s79, %s95
    %p97 = scmp.eq.s32.totalorder %s15, 0
    %p98 = por %p96, %p97
    %s99 = ssub.s32 %s16, %s28
    %s100 = ssub.s32 %s17, %s24
    %s101 = sor.u32 %s99, %s100
    %p102 = scmp.eq.s32.totalorder %s101, 0
    %s104 = sadd.s32 %s103, 1
    %s105 = scalar_select %p102, %s103, %s104
    %p108 = pneg %p102
    %p109 = scmp.eq.s32.totalorder %s9, 1
    %p110 = por %p108, %p109
    %p111 = scmp.ne.s32.totalorder %s103, %s106
    %p112 = scmp.eq.s32.totalorder %s9, 0
    %p113 = por %p111, %p112
    %p114 = scmp.ne.s32.totalorder %s103, %s106
    %p115 = scmp.eq.s32.totalorder %s14, 1
    %p116 = por %p114, %p115
    %p117 = scmp.ne.s32.totalorder %s106, %s107
    %p118 = scmp.eq.s32.totalorder %s14, 0
    %p119 = por %p117, %p118
    %p120 = scmp.ne.s32.totalorder %s106, %s107
    %p121 = scmp.eq.s32.totalorder %s15, 1
    %p122 = por %p120, %p121
    %p124 = scmp.ne.s32.totalorder %s107, %s123
    %p125 = scmp.eq.s32.totalorder %s15, 0
    %p126 = por %p124, %p125
    %p127 = scmp.le.s32.totalorder 1, %s9
    %p128 = scmp.lt.s32.totalorder %s9, 3
    %p129 = pnand %p127, %p128
    %p130 = pneg %p129
    // Predicated region
    $region9: #{cnn_block_forward.1} parent=5 // pred_check
      _
    $region10: #{cnn_block_forward.1} parent=5 // pred_check_branch
      %132 = sbr.rel (%p129) target = $region12
    $region11: #{cnn_block_forward.1} parent=5 // pred_region
      %s133 = ssub.s32 %s9, 1
      // Predicated region
      $region13: #{cnn_block_forward.1} parent=11 // pred_check
        %p134 = pneg %p42
      $region14: #{cnn_block_forward.1} parent=11 // pred_check_branch
        %136 = sbr.rel (%p134) target = $region16
      $region15: #{cnn_block_forward.1} parent=11 // pred_region
        _
      $region16: #{cnn_block_forward.1} parent=11 // pred_fallthru
        _
      // Predicated region
      $region17: #{cnn_block_forward.1} parent=11 // pred_check
        %p137 = pneg %p63
      $region18: #{cnn_block_forward.1} parent=11 // pred_check_branch
        %139 = sbr.rel (%p137) target = $region20
      $region19: #{cnn_block_forward.1} parent=11 // pred_region
        _
      $region20: #{cnn_block_forward.1} parent=11 // pred_fallthru
        _
    $region12: #{cnn_block_forward.1} parent=5 // pred_fallthru
      _
    %p140 = scmp.lt.s32.totalorder %s9, 2
    // Predicated region
    $region21: #{cnn_block_forward.1} parent=5 // pred_check
      %p141 = pneg %p140
    $region22: #{cnn_block_forward.1} parent=5 // pred_check_branch
      %143 = sbr.rel (%p141) target = $region24
    $region23: #{cnn_block_forward.1} parent=5 // pred_region
      // Predicated region
      $region25: #{cnn_block_forward.1} parent=23 // pred_check
        %p144 = pneg %p85
      $region26: #{cnn_block_forward.1} parent=23 // pred_check_branch
        %146 = sbr.rel (%p144) target = $region28
      $region27: #{cnn_block_forward.1} parent=23 // pred_region
        %s147 = smul.u32 2, %s17
        %p148 = scmp.lt.s32.totalorder %s16, 1
        %s149 = scalar_select %p148, %s16, 1
        %p150 = scmp.lt.s32.totalorder %s147, 1
        %s151 = scalar_select %p150, %s147, 1
        %s152 = smul.addr %s149, 8
        %s153 = sadd.s32 %s151, %s152
        %s154 = smul.addr %s153, 4
        %s155 = scalar_lea.vmem %s2, %s154
        %s156 = smul.u32 2, %s17
      $region28: #{cnn_block_forward.1} parent=23 // pred_fallthru
        _
    $region24: #{cnn_block_forward.1} parent=5 // pred_fallthru
      _
    %p157 = scmp.le.s32.totalorder 1, %s9
    %p158 = scmp.lt.s32.totalorder %s9, 3
    %p159 = pnand %p157, %p158
    %p160 = pneg %p159
    // Predicated region
    $region29: #{cnn_block_forward.1} parent=5 // pred_check
      _
    $region30: #{cnn_block_forward.1} parent=5 // pred_check_branch
      %162 = sbr.rel (%p159) target = $region32
    $region31: #{cnn_block_forward.1} parent=5 // pred_region
      %s163 = ssub.s32 %s9, 1
      %p164 = pneg %p42
      %p165 = pneg %p39
      %p166 = pneg %p63
      %p167 = pneg %p60
      %s168 = smul.u32 2, %s19
      %p169 = scmp.lt.s32.totalorder %s18, 1
      %s170 = scalar_select %p169, %s18, 1
      %p171 = scmp.lt.s32.totalorder %s168, 1
      %s172 = scalar_select %p171, %s168, 1
      %s173 = smul.addr %s170, 8
      %s174 = sadd.s32 %s172, %s173
      %s175 = smul.addr %s174, 4
      %s176 = scalar_lea.vmem %s2, %s175
      %p177 = pneg %p91
      %p178 = pneg %p88
      %p179 = pneg %p119
      %p180 = pneg %p116
      %s181 = smul.u32 2, %s19
      %p182 = scmp.lt.s32.totalorder %s18, 1
      %s183 = scalar_select %p182, %s18, 1
      %p184 = scmp.lt.s32.totalorder %s181, 1
      %s185 = scalar_select %p184, %s181, 1
      %s186 = smul.addr %s183, 2
      %s187 = sadd.s32 %s185, %s186
      %s188 = smul.addr %s187, 8
      %s189 = scalar_lea.vmem %s3, %s188
      %s190 = smul.u32 2, %s19
      %p191 = scmp.lt.s32.totalorder %s18, 1
      %s192 = scalar_select %p191, %s18, 1
      %p193 = scmp.lt.s32.totalorder %s190, 1
      %s194 = scalar_select %p193, %s190, 1
      %s195 = smul.addr %s192, 8
      %s196 = sadd.s32 %s194, %s195
      %s197 = smul.addr %s196, 4
      %s198 = scalar_lea.vmem %s2, %s197
      %s199 = smul.u32 2, %s19
      %s200 = smul.u32 2, %s19
      %p201 = scmp.lt.s32.totalorder %s18, 1
      %s202 = scalar_select %p201, %s18, 1
      %p203 = scmp.lt.s32.totalorder %s200, 1
      %s204 = scalar_select %p203, %s200, 1
      %s205 = smul.addr %s202, 2
      %s206 = sadd.s32 %s204, %s205
      %s207 = smul.addr %s206, 8
      %s208 = scalar_lea.vmem %s3, %s207
      %s209 = smul.u32 2, %s19
      %v211 = vld [vmem:[%s0] sm:$0xf]
      %v212 = vld [vmem:[%s198] sm:$0xff]
      %v213 = vld [vmem:[%s198 + $0x8] sm:$0xff]
      %v214 = vld [vmem:[%s198 + $0x10] sm:$0xff]
      %v215 = vld [vmem:[%s198 + $0x18] sm:$0xff]
      %v216 = vld [vmem:[%s1] sm:$0xff]
      %218 = vset.pattern.permute.xlu0 0
      %219 = vperm.xlu0 %218, %v216
      %v220 = vpop.permute.xlu0 %219
      %v226 = vunpack.c.l.b16 %v212
      %v227 = vunpack.c.h.b16 %v212
      %v228 = vunpack.c.l.b16 %v213
      %v229 = vunpack.c.h.b16 %v213
      %v230 = vunpack.c.l.b16 %v214
      %v231 = vunpack.c.h.b16 %v214
      %v232 = vunpack.c.l.b16 %v215
      %v233 = vunpack.c.h.b16 %v215
      %v234 = vpack.c.b16 %v228, %v226
      %v235 = vpack.c.b16 %v229, %v227
      %v236 = vpack.c.b16 %v232, %v230
      %v237 = vpack.c.b16 %v233, %v231
      %vm242 = vcmask 261120
      %v244 = vsel %vm242, %v211, 0
      %246 = vmatprep.subr.bf16.mxu0 0
      %247 = vmatpush1.bf16.msra.mxu0 0
      %248 = vmatprep.subr.bf16.mxu0 0
      %249 = vmatpush1.bf16.msra.mxu0 0
      %250 = vmatprep.subr.bf16.mxu0 0
      %251 = vmatpush1.bf16.msra.mxu0 0
      %252 = vmatprep.subr.bf16.mxu0 0
      %253 = vmatpush1.bf16.msra.mxu0 0
      %254 = vmatprep.subr.bf16.mxu0 0
      %255 = vmatpush1.bf16.msra.mxu0 0
      %256 = vmatprep.subr.bf16.mxu0 0
      %257 = vmatpush1.bf16.msra.mxu0 0
      %258 = vmatprep.subr.bf16.mxu0 %v237
      %259 = vmatpush1.bf16.msra.mxu0 %v236
      %260 = vmatprep.subr.bf16.mxu0 %v235
      %261 = vmatpush1.bf16.msra.mxu0 %v234
      %262 = vmatprep.subr.bf16.mxu0 0
      %263 = vmatpush2.bf16.msra.mxu0 0
      %264 = vmatprep.subr.bf16.mxu0 0
      %265 = vmatpush2.bf16.msra.mxu0 0
      %266 = vmatprep.subr.bf16.mxu0 0
      %267 = vmatpush2.bf16.msra.mxu0 0
      %268 = vmatprep.subr.bf16.mxu0 0
      %269 = vmatpush2.bf16.msra.mxu0 0
      %270 = vmatprep.subr.bf16.mxu0 0
      %271 = vmatpush2.bf16.msra.mxu0 0
      %272 = vmatprep.subr.bf16.mxu0 0
      %273 = vmatpush2.bf16.msra.mxu0 0
      %274 = vmatprep.subr.bf16.mxu0 0
      %275 = vmatpush2.bf16.msra.mxu0 0
      %276 = vmatprep.subr.bf16.mxu0 0
      %277 = vmatpush2.bf16.msra.mxu0 0
      %278 = vmatprep.mubr.bf16.mxu0 0
      %279 = vmatmul.mubr.bf16.gmra.mxu0 %v244
      %v280 = vpop.f32.mrf.mxu0
      %v281 = vadd.f32 %v220, %v280
      %v282 = vpop.f32.mrf.mxu0
      %v283 = vadd.f32 %v220, %v282
      %v284 = vpop.f32.mrf.mxu0
      %v285 = vpop.f32.mrf.mxu0
      %286 = vdwg.mxu0
      %v287 = vmin.f32 %v281, 20.0
      %v288 = vmin.f32 %v283, 20.0
      %vm289 = vcmp.gt.f32.partialorder %v281, 20.0
      %vm290 = vcmp.gt.f32.partialorder %v283, 20.0
      %v291 = vmul.f32 %v287, 1.442695
      %v292 = vpow.pop %v291
      %v293 = vmul.f32 %v288, 1.442695
      %v294 = vpow.pop %v293
      %v295 = vadd.f32 %v292, 1.0
      %v296 = vlog2.pop %v295
      %v297 = vmul.f32 %v296, 0.6931472
      %v298 = vmul.f32 -0.5, %v292
      %v299 = vadd.f32 %v298, 1.0
      %v300 = vmul.f32 %v299, %v292
      %v301 = vand.u32 2147483647, %v292
      %vm302 = vcmp.lt.f32.partialorder %v301, 0.0004427343
      %v303 = vsel %vm302, %v300, %v297
      %v304 = vadd.f32 %v294, 1.0
      %v305 = vlog2.pop %v304
      %v306 = vmul.f32 %v305, 0.6931472
      %v307 = vmul.f32 -0.5, %v294
      %v308 = vadd.f32 %v307, 1.0
      %v309 = vmul.f32 %v308, %v294
      %v310 = vand.u32 2147483647, %v294
      %vm311 = vcmp.lt.f32.partialorder %v310, 0.0004427343
      %v312 = vsel %vm311, %v309, %v306
      %v313 = vsel %vm289, %v281, %v303
      %v314 = vsel %vm290, %v283, %v312
      %315 = vst [vmem:[%s208] sm:$0xff] %v313
      %316 = vst [vmem:[%s208 + $0x8] sm:$0xff] %v314
      %s317 = smul.u32 2, %s19
      %p318 = scmp.lt.s32.totalorder %s18, 1
      %s319 = scalar_select %p318, %s18, 1
      %p320 = scmp.lt.s32.totalorder %s317, 1
      %s321 = scalar_select %p320, %s317, 1
      %s322 = smul.addr %s319, 2
      %s323 = sadd.s32 %s321, %s322
      %s324 = smul.addr %s323, 8
      %s325 = scalar_lea.vmem %s3, %s324
      // Predicated region
      $region33: #{cnn_block_forward.1} parent=31 // pred_check
        %p326 = pneg %p116
      $region34: #{cnn_block_forward.1} parent=31 // pred_check_branch
        %328 = sbr.rel (%p326) target = $region36
      $region35: #{cnn_block_forward.1} parent=31 // pred_region
        %s329 = smul.u32 2, %s19
      $region36: #{cnn_block_forward.1} parent=31 // pred_fallthru
        _
    $region32: #{cnn_block_forward.1} parent=5 // pred_fallthru
      _
    %p330 = scmp.le.s32.totalorder 2, %s9
    // Predicated region
    $region37: #{cnn_block_forward.1} parent=5 // pred_check
      %p331 = pneg %p330
    $region38: #{cnn_block_forward.1} parent=5 // pred_check_branch
      %333 = sbr.rel (%p331) target = $region40
    $region39: #{cnn_block_forward.1} parent=5 // pred_region
      %s334 = ssub.s32 %s9, 2
      // Predicated region
      $region41: #{cnn_block_forward.1} parent=39 // pred_check
        %p335 = pneg %p122
      $region42: #{cnn_block_forward.1} parent=39 // pred_check_branch
        %337 = sbr.rel (%p335) target = $region44
      $region43: #{cnn_block_forward.1} parent=39 // pred_region
        %s338 = smul.u32 2, %s21
        %p339 = scmp.lt.s32.totalorder %s20, 1
        %s340 = scalar_select %p339, %s20, 1
        %p341 = scmp.lt.s32.totalorder %s338, 1
        %s342 = scalar_select %p341, %s338, 1
        %s343 = smul.addr %s340, 2
        %s344 = sadd.s32 %s342, %s343
        %s345 = smul.addr %s344, 8
        %s346 = scalar_lea.vmem %s3, %s345
      $region44: #{cnn_block_forward.1} parent=39 // pred_fallthru
        _
    $region40: #{cnn_block_forward.1} parent=5 // pred_fallthru
      _
  $region6: #{cnn_block_forward.1} parent=0 // loop_footer
    %s13 = sadd.s32 1, %s9
  $region7: #{cnn_block_forward.1} parent=0 // loop_footer_branch
    %8 = sbr.rel target = $region3
  $region8: #{cnn_block_forward.1} parent=0 // loop_exit
    _

</llo_original>
